<compile_context>
chip_gen: v6e
topology: v6e:2x2x1
jax: 0.10.0
libtpu: 0.0.40
codegen_flags: <defaults>
</compile_context>

<pallas_src>
import jax
import jax.numpy as jnp
from jax.experimental import pallas as pl
from jax.experimental.pallas import tpu as pltpu


def _round_up(n, m):
    return ((n + m - 1) // m) * m


def _batch_dim_semantics():
    """CORE_PARALLEL on v7x (2 TCs/chip) so the batch grid is sharded across
    both TensorCores; plain "parallel" elsewhere (1 TC -> no-op either way)."""
    try:
        kind = jax.devices()[0].device_kind.lower()
    except Exception:  # pragma: no cover - defensive
        kind = ""
    core_parallel = getattr(pltpu, "CORE_PARALLEL", None)
    if core_parallel is not None and "7" in kind:
        return (core_parallel,)
    return ("parallel",)


def critic_kernel(x_ref, w1_ref, b1_ref, w2_ref, b2_ref, w3_ref, b3_ref, o_ref):
    # x streamed in f32; cast to bf16 on the VPU right before the MXU dot
    # (removes the wrapper-side cast pass and halves nothing extra on HBM).
    x = x_ref[...].astype(jnp.bfloat16)                               # (TB, S)

    # Layer 1: Linear(S, H1) + ReLU   (Dropout == identity in eval)
    h1 = jnp.dot(x, w1_ref[...], preferred_element_type=jnp.float32)  # MXU, f32 acc
    h1 = jnp.maximum(h1 + b1_ref[...], 0.0)                           # (TB, H1) f32

    # Layer 2: Linear(H1, H2) + ReLU  (Dropout == identity in eval)
    h2 = jnp.dot(h1.astype(jnp.bfloat16), w2_ref[...],
                 preferred_element_type=jnp.float32)                  # MXU, f32 acc
    h2 = jnp.maximum(h2 + b2_ref[...], 0.0)                           # (TB, H2) f32

    # Layer 3: Linear(H2, 1) — N=1 matmul wastes the MXU; use VPU mul + lane
    # reduction (XLU) against the (1, H2) weight row instead.
    v = jnp.sum(h2 * w3_ref[...], axis=-1, keepdims=True)             # (TB, 1) f32
    o_ref[...] = v + b3_ref[...]


def critic_forward(x, params, *, tb=1024):
    """Critic value head forward (eval mode: Dropout = identity).

    x: (B, state_dim) float32. params: dict of w1,b1,w2,b2,w3,b3.
    tb: batch tile (rows per grid step). Rounded to a multiple of 32 and
    clamped to the padded batch; 1024-2048 amortizes the ~0.35 us per-step
    overhead on all of v5e/v6e/v7x for this weight footprint.
    """
    B, S = x.shape
    H1 = params["w1"].shape[1]
    H2 = params["w2"].shape[1]

    # Tile size: multiple of 32 rows (bf16 native (16,128) tile, with margin),
    # no larger than the padded batch.
    TB = min(int(tb), _round_up(B, 32))
    TB = _round_up(TB, 32)
    Bp = _round_up(B, TB)

    # Ragged tail only: pad with zeros (padded rows produce bias-only values
    # and are sliced off below). Divisible batches take no pad pass at all.
    if Bp != B:
        x = jnp.pad(x, ((0, Bp - B), (0, 0)))

    x = x.astype(jnp.float32)                               # streamed f32, cast in-kernel
    w1 = params["w1"].astype(jnp.bfloat16)
    w2 = params["w2"].astype(jnp.bfloat16)
    b1 = params["b1"].astype(jnp.float32)
    b2 = params["b2"].astype(jnp.float32)
    w3 = params["w3"].reshape(1, H2).astype(jnp.float32)    # VPU path stays f32
    b3 = params["b3"].reshape(1, 1).astype(jnp.float32)

    grid = (pl.cdiv(Bp, TB),)

    # Advisory cost hint so XLA schedules the producer of x / downstream
    # consumers around this custom call sensibly.
    flops = 2 * Bp * (S * H1 + H1 * H2 + H2)
    bytes_accessed = (
        Bp * S * 4 + Bp * 4                 # x in (f32), value out (f32)
        + S * H1 * 2 + H1 * H2 * 2          # bf16 weights
        + (H1 + H2 + H2 + 1) * 4            # f32 biases + w3 row
    )
    cost = pl.CostEstimate(flops=flops, transcendentals=0,
                           bytes_accessed=bytes_accessed)

    out = pl.pallas_call(
        critic_kernel,
        out_shape=jax.ShapeDtypeStruct((Bp, 1), jnp.float32),
        grid_spec=pltpu.PrefetchScalarGridSpec(
            num_scalar_prefetch=0,
            grid=grid,
            in_specs=[
                # Streamed operand: one batch tile per grid step.
                pl.BlockSpec((TB, S), lambda i: (i, 0)),
                # Weights / biases: full extent, same block every step -> resident.
                pl.BlockSpec((S, H1), lambda i: (0, 0)),
                pl.BlockSpec((1, H1), lambda i: (0, 0)),
                pl.BlockSpec((H1, H2), lambda i: (0, 0)),
                pl.BlockSpec((1, H2), lambda i: (0, 0)),
                pl.BlockSpec((1, H2), lambda i: (0, 0)),
                pl.BlockSpec((1, 1), lambda i: (0, 0)),
            ],
            out_specs=pl.BlockSpec((TB, 1), lambda i: (i, 0)),
        ),
        compiler_params=pltpu.CompilerParams(
            dimension_semantics=_batch_dim_semantics(),
        ),
        cost_estimate=cost,
    )(x, w1, b1, w2, b2, w3, b3)

    return out[:B]


def init_critic_params(key, state_dim, hidden_sizes=(256, 128)):
    """Kaiming-normal weights (fan_in, gain=sqrt(2)), zero biases — matches
    nn.init.kaiming_normal_ + constant_(bias, 0).

    w1/w2 are stored (in, out) (transpose of PyTorch) so the kernel computes
    y = x @ W + b directly; w3 is stored as the (1, H2) row, which is the
    native PyTorch Linear(H2, 1).weight layout.
    """
    h1, h2 = hidden_sizes
    k1, k2, k3 = jax.random.split(key, 3)

    def kaiming(k, fan_in, fan_out):
        std = jnp.sqrt(2.0 / fan_in)
        return jax.random.normal(k, (fan_in, fan_out), jnp.float32) * std

    return {
        "w1": kaiming(k1, state_dim, h1),
        "b1": jnp.zeros((1, h1), jnp.float32),
        "w2": kaiming(k2, h1, h2),
        "b2": jnp.zeros((1, h2), jnp.float32),
        "w3": kaiming(k3, h2, 1).reshape(1, h2),
        "b3": jnp.zeros((1, 1), jnp.float32),
    }


def critic_ref(x, p):
    """Pure-JAX reference (eval mode: dropout = identity), mirroring the
    kernel's bf16-matmul / f32-accumulate numerics so tolerances stay tight.
    Note: a pure-f32 PyTorch forward differs from this at the ~1e-2 level
    because of the bf16 MXU inputs."""
    h1 = jnp.dot(x.astype(jnp.bfloat16), p["w1"].astype(jnp.bfloat16),
                 preferred_element_type=jnp.float32) + p["b1"]
    h1 = jnp.maximum(h1, 0.0)
    h2 = jnp.dot(h1.astype(jnp.bfloat16), p["w2"].astype(jnp.bfloat16),
                 preferred_element_type=jnp.float32) + p["b2"]
    h2 = jnp.maximum(h2, 0.0)
    return jnp.sum(h2 * p["w3"].reshape(1, -1), axis=-1, keepdims=True) + p["b3"]


if __name__ == "__main__":
    STATE_DIM = 32
    HIDDEN = (256, 128)

    key = jax.random.PRNGKey(0)
    kx, kx2, kp = jax.random.split(key, 3)
    params = init_critic_params(kp, STATE_DIM, HIDDEN)

    # 1) Small demo batch: single tile (TB clamped to the 32-row-padded batch).
    B = 8
    x = jax.random.normal(kx, (B, STATE_DIM), jnp.float32)
    out = jax.block_until_ready(critic_forward(x, params))
    ref = critic_ref(x, params)
    assert out.shape == (B, 1), out.shape
    assert jnp.allclose(out, ref, atol=2e-2, rtol=2e-2), (
        "mismatch vs reference (B=8): max abs err "
        f"{float(jnp.max(jnp.abs(out - ref)))}"
    )

    # 2) Multi-tile batch with a ragged tail: exercises the grid, resident
    #    weights, and the wrapper-side pad path.
    B2 = 200
    x2 = jax.random.normal(kx2, (B2, STATE_DIM), jnp.float32)
    out2 = jax.block_until_ready(critic_forward(x2, params, tb=64))
    ref2 = critic_ref(x2, params)
    assert out2.shape == (B2, 1), out2.shape
    assert jnp.allclose(out2, ref2, atol=2e-2, rtol=2e-2), (
        "mismatch vs reference (B=200, tb=64): max abs err "
        f"{float(jnp.max(jnp.abs(out2 - ref2)))}"
    )

    print("KERNEL_OK")
</pallas_src>

<mosaic_0001>
module attributes {stable_mosaic.version = 11 : i64} {
  func.func @critic_kernel(%arg0: i32, %arg1: memref<32x32xf32, #tpu.memory_space<vmem>>, %arg2: memref<32x256xbf16, #tpu.memory_space<vmem>>, %arg3: memref<1x256xf32, #tpu.memory_space<vmem>>, %arg4: memref<256x128xbf16, #tpu.memory_space<vmem>>, %arg5: memref<1x128xf32, #tpu.memory_space<vmem>>, %arg6: memref<1x128xf32, #tpu.memory_space<vmem>>, %arg7: memref<1x1xf32, #tpu.memory_space<vmem>>, %arg8: memref<32x1xf32, #tpu.memory_space<vmem>>) attributes {dimension_semantics = [#tpu.dimension_semantics<parallel>], iteration_bounds = array<i64: 1>, scalar_prefetch = 0 : i64, scratch_operands = 0 : i64, tpu.core_type = #tpu.core_type<tc>, window_params = [{transform_indices = @transform_0, window_bounds = array<i64: 32, 32>}, {pipeline_mode = #tpu.pipeline_mode<synchronous>, transform_indices = @transform_1, window_bounds = array<i64: 32, 256>}, {pipeline_mode = #tpu.pipeline_mode<synchronous>, transform_indices = @transform_2, window_bounds = array<i64: 1, 256>}, {pipeline_mode = #tpu.pipeline_mode<synchronous>, transform_indices = @transform_3, window_bounds = array<i64: 256, 128>}, {pipeline_mode = #tpu.pipeline_mode<synchronous>, transform_indices = @transform_4, window_bounds = array<i64: 1, 128>}, {pipeline_mode = #tpu.pipeline_mode<synchronous>, transform_indices = @transform_5, window_bounds = array<i64: 1, 128>}, {pipeline_mode = #tpu.pipeline_mode<synchronous>, transform_indices = @transform_6, window_bounds = array<i64: 1, 1>}, {transform_indices = @transform_7, window_bounds = array<i64: 32, 1>}]} {
    %c0 = arith.constant 0 : index
    %c0_0 = arith.constant 0 : index
    %0 = vector.load %arg1[%c0, %c0_0] : memref<32x32xf32, #tpu.memory_space<vmem>>, vector<32x32xf32>
    %1 = arith.truncf %0 : vector<32x32xf32> to vector<32x32xbf16>
    %c0_1 = arith.constant 0 : index
    %c0_2 = arith.constant 0 : index
    %2 = vector.load %arg2[%c0_1, %c0_2] : memref<32x256xbf16, #tpu.memory_space<vmem>>, vector<32x256xbf16>
    %cst = arith.constant dense<0.000000e+00> : vector<32x256xf32>
    %3 = tpu.matmul %1, %2, %cst {dimension_numbers = #tpu.dot_dimension_numbers<[1], [0], [0], [1], [0, 0, 1, 1], [], []>} : vector<32x32xbf16>, vector<32x256xbf16>, vector<32x256xf32> -> vector<32x256xf32>
    %c0_3 = arith.constant 0 : index
    %c0_4 = arith.constant 0 : index
    %4 = vector.load %arg3[%c0_3, %c0_4] : memref<1x256xf32, #tpu.memory_space<vmem>>, vector<1x256xf32>
    %5 = vector.broadcast %4 : vector<1x256xf32> to vector<32x256xf32>
    %6 = arith.addf %3, %5 : vector<32x256xf32>
    %cst_5 = arith.constant 0.000000e+00 : f32
    %7 = vector.broadcast %cst_5 : f32 to vector<32x256xf32>
    %8 = arith.maximumf %6, %7 : vector<32x256xf32>
    %9 = arith.truncf %8 : vector<32x256xf32> to vector<32x256xbf16>
    %c0_6 = arith.constant 0 : index
    %c0_7 = arith.constant 0 : index
    %10 = vector.load %arg4[%c0_6, %c0_7] : memref<256x128xbf16, #tpu.memory_space<vmem>>, vector<256x128xbf16>
    %cst_8 = arith.constant dense<0.000000e+00> : vector<32x128xf32>
    %11 = tpu.matmul %9, %10, %cst_8 {dimension_numbers = #tpu.dot_dimension_numbers<[1], [0], [0], [1], [0, 0, 1, 1], [], []>} : vector<32x256xbf16>, vector<256x128xbf16>, vector<32x128xf32> -> vector<32x128xf32>
    %c0_9 = arith.constant 0 : index
    %c0_10 = arith.constant 0 : index
    %12 = vector.load %arg5[%c0_9, %c0_10] : memref<1x128xf32, #tpu.memory_space<vmem>>, vector<1x128xf32>
    %13 = vector.broadcast %12 : vector<1x128xf32> to vector<32x128xf32>
    %14 = arith.addf %11, %13 : vector<32x128xf32>
    %cst_11 = arith.constant 0.000000e+00 : f32
    %15 = vector.broadcast %cst_11 : f32 to vector<32x128xf32>
    %16 = arith.maximumf %14, %15 : vector<32x128xf32>
    %c0_12 = arith.constant 0 : index
    %c0_13 = arith.constant 0 : index
    %17 = vector.load %arg6[%c0_12, %c0_13] : memref<1x128xf32, #tpu.memory_space<vmem>>, vector<1x128xf32>
    %18 = vector.broadcast %17 : vector<1x128xf32> to vector<32x128xf32>
    %19 = arith.mulf %16, %18 : vector<32x128xf32>
    %cst_14 = arith.constant dense<0.000000e+00> : vector<32xf32>
    %20 = vector.multi_reduction <add>, %19, %cst_14 [1] : vector<32x128xf32> to vector<32xf32>
    %21 = vector.shape_cast %20 : vector<32xf32> to vector<32x1xf32>
    %c0_15 = arith.constant 0 : index
    %c0_16 = arith.constant 0 : index
    %22 = vector.load %arg7[%c0_15, %c0_16] : memref<1x1xf32, #tpu.memory_space<vmem>>, vector<1x1xf32>
    %23 = vector.broadcast %22 : vector<1x1xf32> to vector<32x1xf32>
    %24 = arith.addf %21, %23 : vector<32x1xf32>
    %c0_17 = arith.constant 0 : index
    %c0_18 = arith.constant 0 : index
    %25 = vector.load %arg8[%c0_17, %c0_18] : memref<32x1xf32, #tpu.memory_space<vmem>>, vector<32x1xf32>
    tpu.vector_store %arg8[%c0_17, %c0_18], %24 {strides = array<i32>} : memref<32x1xf32, #tpu.memory_space<vmem>>, vector<32x1xf32>,
    return
  }
  func.func @transform_0(%arg0: i32) -> (i32, i32) {
    %c0_i32 = arith.constant 0 : i32
    %c0_i32_0 = arith.constant 0 : i32
    return %arg0, %c0_i32 : i32, i32
  }
  func.func @transform_1(%arg0: i32) -> (i32, i32) {
    %c0_i32 = arith.constant 0 : i32
    %c0_i32_0 = arith.constant 0 : i32
    %c0_i32_1 = arith.constant 0 : i32
    return %c0_i32, %c0_i32_0 : i32, i32
  }
  func.func @transform_2(%arg0: i32) -> (i32, i32) {
    %c0_i32 = arith.constant 0 : i32
    %c0_i32_0 = arith.constant 0 : i32
    %c0_i32_1 = arith.constant 0 : i32
    return %c0_i32, %c0_i32_0 : i32, i32
  }
  func.func @transform_3(%arg0: i32) -> (i32, i32) {
    %c0_i32 = arith.constant 0 : i32
    %c0_i32_0 = arith.constant 0 : i32
    %c0_i32_1 = arith.constant 0 : i32
    return %c0_i32, %c0_i32_0 : i32, i32
  }
  func.func @transform_4(%arg0: i32) -> (i32, i32) {
    %c0_i32 = arith.constant 0 : i32
    %c0_i32_0 = arith.constant 0 : i32
    %c0_i32_1 = arith.constant 0 : i32
    return %c0_i32, %c0_i32_0 : i32, i32
  }
  func.func @transform_5(%arg0: i32) -> (i32, i32) {
    %c0_i32 = arith.constant 0 : i32
    %c0_i32_0 = arith.constant 0 : i32
    %c0_i32_1 = arith.constant 0 : i32
    return %c0_i32, %c0_i32_0 : i32, i32
  }
  func.func @transform_6(%arg0: i32) -> (i32, i32) {
    %c0_i32 = arith.constant 0 : i32
    %c0_i32_0 = arith.constant 0 : i32
    %c0_i32_1 = arith.constant 0 : i32
    return %c0_i32, %c0_i32_0 : i32, i32
  }
  func.func @transform_7(%arg0: i32) -> (i32, i32) {
    %c0_i32 = arith.constant 0 : i32
    %c0_i32_0 = arith.constant 0 : i32
    return %arg0, %c0_i32 : i32, i32
  }
}

</mosaic_0001>

<llo_original>
// kernel: tpu_custom_call.1
$region0: #{tpu_custom_call.1}
  #allocation0 [shape = 'u32[]', space=smem, size = 0x4, offset = 0x4, fixed_abs, tag = 'smem constant byte address 0x4 - core index']
  #allocation1 [shape = 'u32[144,128]{1,0:T(1,128)}', space=vmem, size = 0x12000, scoped, tag = 'internal scratch']
  #allocation2 [shape = 'f32[1,1]{1,0:T(1,128)S(1)}', space=vmem, size = 0x200, scoped, tag = 'scoped memory for tpu_custom_call.1']
  %s0 = inlined_call_operand.hbm [shape: f32[32,32], index: 0, kind: input, shape index: {}]
  %s1 = inlined_call_operand.hbm [shape: bf16[32,256], index: 1, kind: input, shape index: {}]
  %s2 = inlined_call_operand.vmem [shape: f32[1,256], index: 2, kind: input, shape index: {}]
  %s3 = inlined_call_operand.hbm [shape: bf16[256,128], index: 3, kind: input, shape index: {}]
  %s4 = inlined_call_operand.vmem [shape: f32[1,128], index: 4, kind: input, shape index: {}]
  %s5 = inlined_call_operand.vmem [shape: f32[1,128], index: 5, kind: input, shape index: {}]
  %s6 = inlined_call_operand.<no memory space> [shape: f32[1,1], index: 6, kind: input, shape index: {}]
  %s7 = inlined_call_operand.vmem [shape: f32[32,1], index: 7, kind: output, shape index: {}]
  %s8 = sld [smem:[#allocation0]]
  $region50: #{tpu_custom_call.1} parent=0
    _
  %s10 = ssub.s32 1, %s8
  %s11 = scalar_select 0, %s10, %s8
  %v12 = vstv %s6
  %13 = vst [vmem:[#allocation2] sm:$0x1] %v12
  $region1: #{tpu_custom_call.1} parent=0
    #allocation3 [shape = 'u8[16384]{0}', space=vmem, size = 0x4000, scoped, tag = 'input window, operand 0, single buffered']
    #allocation4 [shape = 's32[1]{0}', space=sflag, size = 0x4, scoped, tag = 'scoped memory for tpu_custom_call.1']
    #allocation5 [shape = 'u8[16384]{0}', space=vmem, size = 0x4000, scoped, tag = 'input window, operand 1, single buffered']
    #allocation6 [shape = 's32[1]{0}', space=sflag, size = 0x4, scoped, tag = 'scoped memory for tpu_custom_call.1']
    #allocation7 [shape = 'u8[65536]{0}', space=vmem, size = 0x10000, scoped, tag = 'input window, operand 3, single buffered']
    %14 = vsyncpa [#allocation4], 0
    %15 = vsyncpa [#allocation6], 0
    // Predicated region
    $region2: #{tpu_custom_call.1} parent=1 // pred_check
      _
    $region3: #{tpu_custom_call.1} parent=1 // pred_check_branch
      %17 = sbr.rel (0) target = $region5
    $region4: #{tpu_custom_call.1} parent=1 // pred_region
      %s19 = ssub.s32 512, 512
      %20 = vsyncadd [#allocation4], %s19
      %s21 = sshll.u32 [#allocation3], 4
      %s22 = int_to_ptr.vmem [resolvable:$true] %s21
      %27 = dma.hbm_to_vmem [thread:$0]  %s0, 512, %s22, [#allocation4], 128, 128, 8
    $region5: #{tpu_custom_call.1} parent=1 // pred_fallthru
      _
    // Predicated region
    $region6: #{tpu_custom_call.1} parent=1 // pred_check
      _
    $region7: #{tpu_custom_call.1} parent=1 // pred_check_branch
      %29 = sbr.rel (0) target = $region9
    $region8: #{tpu_custom_call.1} parent=1 // pred_region
      %s31 = ssub.s32 512, 512
      %32 = vsyncadd [#allocation6], %s31
      %s33 = sshll.u32 [#allocation5], 4
      %s34 = int_to_ptr.vmem [resolvable:$true] %s33
      %39 = dma.hbm_to_vmem [thread:$0]  %s1, 512, %s34, [#allocation6], 128, 128, 8
    $region9: #{tpu_custom_call.1} parent=1 // pred_fallthru
      _
    // Predicated region
    $region10: #{tpu_custom_call.1} parent=1 // pred_check
      _
    $region11: #{tpu_custom_call.1} parent=1 // pred_check_branch
      %41 = sbr.rel (0) target = $region13
    $region12: #{tpu_custom_call.1} parent=1 // pred_region
      _
    $region13: #{tpu_custom_call.1} parent=1 // pred_fallthru
      _
    // Predicated region
    $region14: #{tpu_custom_call.1} parent=1 // pred_check
      _
    $region15: #{tpu_custom_call.1} parent=1 // pred_check_branch
      %43 = sbr.rel (0) target = $region17
    $region16: #{tpu_custom_call.1} parent=1 // pred_region
      %s45 = ssub.s32 2048, 2048
      %46 = vsyncadd [#allocation6], %s45
      %s47 = sshll.u32 [#allocation7], 4
      %s48 = int_to_ptr.vmem [resolvable:$true] %s47
      %53 = dma.hbm_to_vmem [thread:$0]  %s3, 2048, %s48, [#allocation6], 64, 64, 4
    $region17: #{tpu_custom_call.1} parent=1 // pred_fallthru
      _
    // Predicated region
    $region18: #{tpu_custom_call.1} parent=1 // pred_check
      _
    $region19: #{tpu_custom_call.1} parent=1 // pred_check_branch
      %55 = sbr.rel (0) target = $region21
    $region20: #{tpu_custom_call.1} parent=1 // pred_region
      _
    $region21: #{tpu_custom_call.1} parent=1 // pred_fallthru
      _
    // Predicated region
    $region22: #{tpu_custom_call.1} parent=1 // pred_check
      _
    $region23: #{tpu_custom_call.1} parent=1 // pred_check_branch
      %57 = sbr.rel (0) target = $region25
    $region24: #{tpu_custom_call.1} parent=1 // pred_region
      _
    $region25: #{tpu_custom_call.1} parent=1 // pred_fallthru
      _
    // Predicated region
    $region26: #{tpu_custom_call.1} parent=1 // pred_check
      _
    $region27: #{tpu_custom_call.1} parent=1 // pred_check_branch
      %59 = sbr.rel (0) target = $region29
    $region28: #{tpu_custom_call.1} parent=1 // pred_region
      _
    $region29: #{tpu_custom_call.1} parent=1 // pred_fallthru
      _
    // Predicated region
    $region30: #{tpu_custom_call.1} parent=1 // pred_check
      _
    $region31: #{tpu_custom_call.1} parent=1 // pred_check_branch
      %61 = sbr.rel (0) target = $region33
    $region32: #{tpu_custom_call.1} parent=1 // pred_region
      %62 = dma.done [#allocation4], 512
    $region33: #{tpu_custom_call.1} parent=1 // pred_fallthru
      _
    // Predicated region
    $region34: #{tpu_custom_call.1} parent=1 // pred_check
      _
    $region35: #{tpu_custom_call.1} parent=1 // pred_check_branch
      %64 = sbr.rel (0) target = $region37
    $region36: #{tpu_custom_call.1} parent=1 // pred_region
      %65 = dma.done [#allocation6], 512
    $region37: #{tpu_custom_call.1} parent=1 // pred_fallthru
      _
    // Predicated region
    $region38: #{tpu_custom_call.1} parent=1 // pred_check
      _
    $region39: #{tpu_custom_call.1} parent=1 // pred_check_branch
      %67 = sbr.rel (0) target = $region41
    $region40: #{tpu_custom_call.1} parent=1 // pred_region
      %68 = dma.done [#allocation6], 2048
    $region41: #{tpu_custom_call.1} parent=1 // pred_fallthru
      _
    %v70 = vld [vmem:[#allocation3] sm:$0xff]
    %v71 = vld [vmem:[#allocation3 + $0x8] sm:$0xff]
    %v72 = vld [vmem:[#allocation3 + $0x10] sm:$0xff]
    %v73 = vld [vmem:[#allocation3 + $0x18] sm:$0xff]
    %v74 = vpack.c.bf16 %v71, %v70
    %v75 = vpack.c.bf16 %v73, %v72
    %v76 = vld [vmem:[#allocation5] sm:$0xff]
    %v77 = vld [vmem:[#allocation5 + $0x8] sm:$0xff]
    %v78 = vld [vmem:[#allocation5 + $0x10] sm:$0xff]
    %v79 = vld [vmem:[#allocation5 + $0x18] sm:$0xff]
    %v80 = vld [vmem:[%s2] sm:$0x3]
    %v82 = vlaneseq
    %v83 = vshrl.u32 %v82, 7
    %v84 = vsub.s32 0, %v83
    %v85 = vrot.slane %v80, %v84
    %v86 = vlaneseq
    %v87 = vshrl.u32 %v86, 7
    %v88 = vsub.s32 1, %v87
    %v89 = vrot.slane %v80, %v88
    %v96 = vunpack.c.l.b16 %v76
    %v97 = vunpack.c.h.b16 %v76
    %v98 = vunpack.c.l.b16 %v77
    %v99 = vunpack.c.h.b16 %v77
    %v100 = vunpack.c.l.b16 %v78
    %v101 = vunpack.c.h.b16 %v78
    %v102 = vunpack.c.l.b16 %v79
    %v103 = vunpack.c.h.b16 %v79
    %v104 = vpack.c.b16 %v98, %v96
    %v105 = vpack.c.b16 %v99, %v97
    %v106 = vpack.c.b16 %v102, %v100
    %v107 = vpack.c.b16 %v103, %v101
    %vm112 = vcmask 261120
    %v114 = vsel %vm112, %v74, 0
    %v117 = vsel %vm112, %v75, 0
    %119 = vmatprep.subr.bf16.mxu0 0
    %120 = vmatpush1.bf16.msra.mxu0 0
    %121 = vmatprep.subr.bf16.mxu0 0
    %122 = vmatpush1.bf16.msra.mxu0 0
    %123 = vmatprep.subr.bf16.mxu0 0
    %124 = vmatpush1.bf16.msra.mxu0 0
    %125 = vmatprep.subr.bf16.mxu0 0
    %126 = vmatpush1.bf16.msra.mxu0 0
    %127 = vmatprep.subr.bf16.mxu0 0
    %128 = vmatpush1.bf16.msra.mxu0 0
    %129 = vmatprep.subr.bf16.mxu0 0
    %130 = vmatpush1.bf16.msra.mxu0 0
    %131 = vmatprep.subr.bf16.mxu0 %v107
    %132 = vmatpush1.bf16.msra.mxu0 %v106
    %133 = vmatprep.subr.bf16.mxu0 %v105
    %134 = vmatpush1.bf16.msra.mxu0 %v104
    %135 = vmatprep.subr.bf16.mxu0 0
    %136 = vmatpush2.bf16.msra.mxu0 0
    %137 = vmatprep.subr.bf16.mxu0 0
    %138 = vmatpush2.bf16.msra.mxu0 0
    %139 = vmatprep.subr.bf16.mxu0 0
    %140 = vmatpush2.bf16.msra.mxu0 0
    %141 = vmatprep.subr.bf16.mxu0 0
    %142 = vmatpush2.bf16.msra.mxu0 0
    %143 = vmatprep.subr.bf16.mxu0 0
    %144 = vmatpush2.bf16.msra.mxu0 0
    %145 = vmatprep.subr.bf16.mxu0 0
    %146 = vmatpush2.bf16.msra.mxu0 0
    %147 = vmatprep.subr.bf16.mxu0 0
    %148 = vmatpush2.bf16.msra.mxu0 0
    %149 = vmatprep.subr.bf16.mxu0 0
    %150 = vmatpush2.bf16.msra.mxu0 0
    %151 = vmatprep.mubr.bf16.mxu0 0
    %152 = vmatmul.mubr.bf16.gmra.mxu0 %v114
    %v153 = vpop.f32.mrf.mxu0
    %v154 = vadd.f32 %v85, %v153
    %v155 = vpop.f32.mrf.mxu0
    %v156 = vadd.f32 %v89, %v155
    %v157 = vpop.f32.mrf.mxu0
    %v158 = vadd.f32 %v85, %v157
    %v159 = vpop.f32.mrf.mxu0
    %v160 = vadd.f32 %v89, %v159
    %161 = vmatprep.mubr.bf16.mxu0 0
    %162 = vmatmul.mubr.bf16.gmra.mxu0 %v117
    %v163 = vpop.f32.mrf.mxu0
    %v164 = vadd.f32 %v85, %v163
    %v165 = vpop.f32.mrf.mxu0
    %v166 = vadd.f32 %v89, %v165
    %v167 = vpop.f32.mrf.mxu0
    %v168 = vadd.f32 %v85, %v167
    %v169 = vpop.f32.mrf.mxu0
    %v170 = vadd.f32 %v89, %v169
    %171 = vdwg.mxu0
    %v172 = vmax.f32 %v154, 0.0
    %v173 = vmax.f32 %v156, 0.0
    %v174 = vmax.f32 %v158, 0.0
    %v175 = vmax.f32 %v160, 0.0
    %v176 = vmax.f32 %v164, 0.0
    %v177 = vmax.f32 %v166, 0.0
    %v178 = vmax.f32 %v168, 0.0
    %v179 = vmax.f32 %v170, 0.0
    %v180 = vpack.c.bf16 %v174, %v172
    %v181 = vpack.c.bf16 %v175, %v173
    %v182 = vpack.c.bf16 %v178, %v176
    %v183 = vpack.c.bf16 %v179, %v177
    %v184 = vld [vmem:[#allocation7] sm:$0xf]
    %v185 = vld [vmem:[#allocation7 + $0x4] sm:$0xf]
    %v186 = vld [vmem:[#allocation7 + $0x8] sm:$0xf]
    %v187 = vld [vmem:[#allocation7 + $0xc] sm:$0xf]
    %v188 = vld [vmem:[#allocation7 + $0x10] sm:$0xf]
    %v189 = vld [vmem:[#allocation7 + $0x14] sm:$0xf]
    %v190 = vld [vmem:[#allocation7 + $0x18] sm:$0xf]
    %v191 = vld [vmem:[#allocation7 + $0x1c] sm:$0xf]
    %v192 = vld [vmem:[#allocation7 + $0x20] sm:$0xf]
    %v193 = vld [vmem:[#allocation7 + $0x24] sm:$0xf]
    %v194 = vld [vmem:[#allocation7 + $0x28] sm:$0xf]
    %v195 = vld [vmem:[#allocation7 + $0x2c] sm:$0xf]
    %v196 = vld [vmem:[#allocation7 + $0x30] sm:$0xf]
    %v197 = vld [vmem:[#allocation7 + $0x34] sm:$0xf]
    %v198 = vld [vmem:[#allocation7 + $0x38] sm:$0xf]
    %v199 = vld [vmem:[#allocation7 + $0x3c] sm:$0xf]
    %v200 = vld [vmem:[#allocation7 + $0x40] sm:$0xf]
    %v201 = vld [vmem:[#allocation7 + $0x44] sm:$0xf]
    %v202 = vld [vmem:[#allocation7 + $0x48] sm:$0xf]
    %v203 = vld [vmem:[#allocation7 + $0x4c] sm:$0xf]
    %v204 = vld [vmem:[#allocation7 + $0x50] sm:$0xf]
    %v205 = vld [vmem:[#allocation7 + $0x54] sm:$0xf]
    %v206 = vld [vmem:[#allocation7 + $0x58] sm:$0xf]
    %v207 = vld [vmem:[#allocation7 + $0x5c] sm:$0xf]
    %v208 = vld [vmem:[#allocation7 + $0x60] sm:$0xf]
    %v209 = vld [vmem:[#allocation7 + $0x64] sm:$0xf]
    %v210 = vld [vmem:[#allocation7 + $0x68] sm:$0xf]
    %v211 = vld [vmem:[#allocation7 + $0x6c] sm:$0xf]
    %v212 = vld [vmem:[#allocation7 + $0x70] sm:$0xf]
    %v213 = vld [vmem:[#allocation7 + $0x74] sm:$0xf]
    %v214 = vld [vmem:[#allocation7 + $0x78] sm:$0xf]
    %v215 = vld [vmem:[#allocation7 + $0x7c] sm:$0xf]
    %v216 = vld [vmem:[%s4] sm:$0x1]
    %v218 = vlaneseq
    %v219 = vshrl.u32 %v218, 7
    %v220 = vsub.s32 0, %v219
    %v221 = vrot.slane %v216, %v220
    %v255 = vunpack.c.l.b16 %v184
    %v256 = vunpack.c.l.b16 %v185
    %v257 = vunpack.c.l.b16 %v186
    %v258 = vunpack.c.l.b16 %v187
    %v259 = vunpack.c.l.b16 %v188
    %v260 = vunpack.c.l.b16 %v189
    %v261 = vunpack.c.l.b16 %v190
    %v262 = vunpack.c.l.b16 %v191
    %v263 = vunpack.c.l.b16 %v192
    %v264 = vunpack.c.l.b16 %v193
    %v265 = vunpack.c.l.b16 %v194
    %v266 = vunpack.c.l.b16 %v195
    %v267 = vunpack.c.l.b16 %v196
    %v268 = vunpack.c.l.b16 %v197
    %v269 = vunpack.c.l.b16 %v198
    %v270 = vunpack.c.l.b16 %v199
    %v271 = vunpack.c.l.b16 %v200
    %v272 = vunpack.c.l.b16 %v201
    %v273 = vunpack.c.l.b16 %v202
    %v274 = vunpack.c.l.b16 %v203
    %v275 = vunpack.c.l.b16 %v204
    %v276 = vunpack.c.l.b16 %v205
    %v277 = vunpack.c.l.b16 %v206
    %v278 = vunpack.c.l.b16 %v207
    %v279 = vunpack.c.l.b16 %v208
    %v280 = vunpack.c.l.b16 %v209
    %v281 = vunpack.c.l.b16 %v210
    %v282 = vunpack.c.l.b16 %v211
    %v283 = vunpack.c.l.b16 %v212
    %v284 = vunpack.c.l.b16 %v213
    %v285 = vunpack.c.l.b16 %v214
    %v286 = vunpack.c.l.b16 %v215
    %v287 = vpack.c.b16 %v256, %v255
    %v288 = vpack.c.b16 %v258, %v257
    %v289 = vpack.c.b16 %v260, %v259
    %v290 = vpack.c.b16 %v262, %v261
    %v291 = vpack.c.b16 %v264, %v263
    %v292 = vpack.c.b16 %v266, %v265
    %v293 = vpack.c.b16 %v268, %v267
    %v294 = vpack.c.b16 %v270, %v269
    %v295 = vpack.c.b16 %v272, %v271
    %v296 = vpack.c.b16 %v274, %v273
    %v297 = vpack.c.b16 %v276, %v275
    %v298 = vpack.c.b16 %v278, %v277
    %v299 = vpack.c.b16 %v280, %v279
    %v300 = vpack.c.b16 %v282, %v281
    %v301 = vpack.c.b16 %v284, %v283
    %v302 = vpack.c.b16 %v286, %v285
    %319 = vmatprep.subr.bf16.mxu0 0
    %320 = vmatpush1.bf16.msra.mxu0 %v294
    %321 = vmatprep.subr.bf16.mxu0 0
    %322 = vmatpush1.bf16.msra.mxu0 %v293
    %323 = vmatprep.subr.bf16.mxu0 0
    %324 = vmatpush1.bf16.msra.mxu0 %v292
    %325 = vmatprep.subr.bf16.mxu0 0
    %326 = vmatpush1.bf16.msra.mxu0 %v291
    %327 = vmatprep.subr.bf16.mxu0 0
    %328 = vmatpush1.bf16.msra.mxu0 %v290
    %329 = vmatprep.subr.bf16.mxu0 0
    %330 = vmatpush1.bf16.msra.mxu0 %v289
    %331 = vmatprep.subr.bf16.mxu0 0
    %332 = vmatpush1.bf16.msra.mxu0 %v288
    %333 = vmatprep.subr.bf16.mxu0 0
    %334 = vmatpush1.bf16.msra.mxu0 %v287
    %335 = vmatprep.subr.bf16.mxu0 0
    %336 = vmatpush2.bf16.msra.mxu0 %v302
    %337 = vmatprep.subr.bf16.mxu0 0
    %338 = vmatpush2.bf16.msra.mxu0 %v301
    %339 = vmatprep.subr.bf16.mxu0 0
    %340 = vmatpush2.bf16.msra.mxu0 %v300
    %341 = vmatprep.subr.bf16.mxu0 0
    %342 = vmatpush2.bf16.msra.mxu0 %v299
    %343 = vmatprep.subr.bf16.mxu0 0
    %344 = vmatpush2.bf16.msra.mxu0 %v298
    %345 = vmatprep.subr.bf16.mxu0 0
    %346 = vmatpush2.bf16.msra.mxu0 %v297
    %347 = vmatprep.subr.bf16.mxu0 0
    %348 = vmatpush2.bf16.msra.mxu0 %v296
    %349 = vmatprep.subr.bf16.mxu0 0
    %350 = vmatpush2.bf16.msra.mxu0 %v295
    %351 = vmatprep.mubr.bf16.mxu0 %v181
    %352 = vmatmul.mubr.bf16.gmra.mxu0 %v180
    %v353 = vpop.f32.mrf.mxu0
    %v354 = vadd.f32 %v221, %v353
    %v355 = vpop.f32.mrf.mxu0
    %v356 = vpop.f32.mrf.mxu0
    %v357 = vadd.f32 %v221, %v356
    %v358 = vpop.f32.mrf.mxu0
    %359 = vmatprep.mubr.bf16.mxu0 %v183
    %360 = vmatmul.mubr.bf16.gmra.mxu0 %v182
    %v361 = vpop.f32.mrf.mxu0
    %v362 = vadd.f32 %v221, %v361
    %v363 = vpop.f32.mrf.mxu0
    %v364 = vpop.f32.mrf.mxu0
    %v365 = vadd.f32 %v221, %v364
    %v366 = vpop.f32.mrf.mxu0
    %367 = vdwg.mxu0
    %v368 = vmax.f32 %v354, 0.0
    %v369 = vmax.f32 %v357, 0.0
    %v370 = vmax.f32 %v362, 0.0
    %v371 = vmax.f32 %v365, 0.0
    %v372 = vld [vmem:[%s5] sm:$0x1]
    %v374 = vlaneseq
    %v375 = vshrl.u32 %v374, 7
    %v376 = vsub.s32 0, %v375
    %v377 = vrot.slane %v372, %v376
    %v379 = vmul.f32 %v368, %v377
    %v380 = vmul.f32 %v369, %v377
    %v381 = vmul.f32 %v370, %v377
    %v382 = vmul.f32 %v371, %v377
    %383 = vadd.xlane.f32.xlu0 %v379
    %v384 = vpop.xlane.xlu0 %383
    %385 = vadd.xlane.f32.xlu0 %v380
    %v386 = vpop.xlane.xlu0 %385
    %387 = vadd.xlane.f32.xlu0 %v381
    %v388 = vpop.xlane.xlu0 %387
    %389 = vadd.xlane.f32.xlu0 %v382
    %v390 = vpop.xlane.xlu0 %389
    %v391 = vld [vmem:[#allocation2] sm:$0x1]
    %v393 = vlaneseq
    %v394 = vshrl.u32 %v393, 7
    %v395 = vsub.s32 0, %v394
    %v396 = vrot.slane %v391, %v395
    %v398 = vadd.f32 %v384, %v396
    %v399 = vadd.f32 %v386, %v396
    %v400 = vadd.f32 %v388, %v396
    %v401 = vadd.f32 %v390, %v396
    %vm402 = vcmask 7168
    %403 = vst.msk [vmem:[%s7] sm:$0xff] %vm402, %v398
    %404 = vst.msk [vmem:[%s7 + $0x8] sm:$0xff] %vm402, %v399
    %405 = vst.msk [vmem:[%s7 + $0x10] sm:$0xff] %vm402, %v400
    %406 = vst.msk [vmem:[%s7 + $0x18] sm:$0xff] %vm402, %v401
    // Predicated region
    $region42: #{tpu_custom_call.1} parent=1 // pred_check
      _
    $region43: #{tpu_custom_call.1} parent=1 // pred_check_branch
      %408 = sbr.rel (0) target = $region45
    $region44: #{tpu_custom_call.1} parent=1 // pred_region
      _
    $region45: #{tpu_custom_call.1} parent=1 // pred_fallthru
      _
    // Predicated region
    $region46: #{tpu_custom_call.1} parent=1 // pred_check
      _
    $region47: #{tpu_custom_call.1} parent=1 // pred_check_branch
      %410 = sbr.rel (0) target = $region49
    $region48: #{tpu_custom_call.1} parent=1 // pred_region
      _
    $region49: #{tpu_custom_call.1} parent=1 // pred_fallthru
      _
    %411 = vsyncpa [#allocation4], 1
    %412 = vsyncpa [#allocation6], 1

</llo_original>
